<compile_context>
chip_gen: v7x
topology: tpu7x:2x2x1
jax: 0.10.0
libtpu: 0.0.40
codegen_flags: <defaults>
</compile_context>

<pallas_src>
import jax
import jax.numpy as jnp
from jax.experimental import pallas as pl
from jax.experimental.pallas import tpu as pltpu

INPUT_DIM = 42
MID_DIM = 21
LATENT_DIM = 14


def autoencoder_kernel(x_ref,                     # (tile_b, 42)
                       w1_ref, b1_ref,            # (42, 21), (1, 21)   encoder Linear 1
                       w2_ref, b2_ref,            # (21, 14), (1, 14)   encoder Linear 2
                       w3_ref, b3_ref,            # (14, 21), (1, 21)   decoder Linear 1
                       w4_ref, b4_ref,            # (21, 42), (1, 42)   decoder Linear 2
                       alpha_ref,                 # (1, 1) in SMEM      PReLU alpha
                       o_ref):                    # (tile_b, 42)
    x = x_ref[...]

    # --- encoder ---  y = x @ W + b  (batch on sublanes, contraction on lanes)
    h = jnp.dot(x, w1_ref[...], preferred_element_type=jnp.float32) + b1_ref[...]
    h = jnp.maximum(h, 0.0)                                   # ReLU
    z = jnp.dot(h, w2_ref[...], preferred_element_type=jnp.float32) + b2_ref[...]
    z = jnp.maximum(z, 0.0)                                   # ReLU

    # --- decoder ---
    d = jnp.dot(z, w3_ref[...], preferred_element_type=jnp.float32) + b3_ref[...]
    d = jnp.maximum(d, 0.0)                                   # ReLU
    y = jnp.dot(d, w4_ref[...], preferred_element_type=jnp.float32) + b4_ref[...]

    # PReLU (single shared alpha, PyTorch default num_parameters=1) — scalar path
    a = alpha_ref[0, 0]
    o_ref[...] = jnp.where(y > 0, y, a * y)


def autoencoder_forward(x, params, *, tile_b=2048):
    """x: (B, INPUT_DIM) f32. params: PyTorch-layout weights (out,in), biases (out,), alpha (1,1)."""
    B, F = x.shape
    assert F == INPUT_DIM
    assert tile_b % 8 == 0, "tile_b must be a multiple of 8 (sublane width)"

    # Pad ragged batches so the batch axis tiles cleanly; padded rows sliced off.
    num_tiles = -(-B // tile_b)
    B_pad = num_tiles * tile_b
    if B_pad != B:
        x = jnp.pad(x, ((0, B_pad - B), (0, 0)))

    # Kernel-side layout: weights (in, out), biases (1, out). These are tiny
    # (<= 42x21) one-time transforms, negligible next to the activation traffic.
    w1, w2, w3, w4 = (params[k].T for k in ("w1", "w2", "w3", "w4"))
    b1, b2, b3, b4 = (params[k].reshape(1, -1) for k in ("b1", "b2", "b3", "b4"))

    grid = (num_tiles,)

    def full(shape):
        # whole-array block, constant index map -> fetched once, reused across grid
        return pl.BlockSpec(shape, lambda i: (0, 0))

    in_specs = [
        pl.BlockSpec((tile_b, INPUT_DIM), lambda i: (i, 0)),       # x (batch-tiled on sublanes)
        full((INPUT_DIM, MID_DIM)), full((1, MID_DIM)),            # w1, b1
        full((MID_DIM, LATENT_DIM)), full((1, LATENT_DIM)),        # w2, b2
        full((LATENT_DIM, MID_DIM)), full((1, MID_DIM)),           # w3, b3
        full((MID_DIM, INPUT_DIM)), full((1, INPUT_DIM)),          # w4, b4
        pl.BlockSpec(memory_space=pltpu.MemorySpace.SMEM),         # alpha (scalar path)
    ]
    out_spec = pl.BlockSpec((tile_b, INPUT_DIM), lambda i: (i, 0))

    # Advisory cost estimate: mem-bound kernel (~14 FLOP/byte).
    mac = (INPUT_DIM * MID_DIM + MID_DIM * LATENT_DIM
           + LATENT_DIM * MID_DIM + MID_DIM * INPUT_DIM)
    param_elems = mac + 2 * MID_DIM + LATENT_DIM + INPUT_DIM + 1
    cost = pl.CostEstimate(
        flops=2 * B_pad * mac,
        transcendentals=0,
        bytes_accessed=B_pad * 2 * INPUT_DIM * 4 + param_elems * 4,
    )

    out = pl.pallas_call(
        autoencoder_kernel,
        out_shape=jax.ShapeDtypeStruct((B_pad, INPUT_DIM), jnp.float32),
        grid_spec=pltpu.PrefetchScalarGridSpec(
            num_scalar_prefetch=0,
            grid=grid,
            in_specs=in_specs,
            out_specs=out_spec,
        ),
        compiler_params=pltpu.CompilerParams(
            dimension_semantics=("parallel",)),   # batch axis shards across TCs
        cost_estimate=cost,
    )(x,
      w1, b1, w2, b2, w3, b3, w4, b4,
      params["alpha"])

    return out[:B] if B_pad != B else out


def init_params(key):
    """Deterministic PyTorch-style init: U(-1/sqrt(fan_in), 1/sqrt(fan_in)).

    Weights stored (out_dim, in_dim) (PyTorch layout), biases (out_dim,)."""
    def linear(key, fan_in, fan_out):
        kw, kb = jax.random.split(key)
        bound = 1.0 / jnp.sqrt(fan_in)
        w = jax.random.uniform(kw, (fan_out, fan_in), jnp.float32, -bound, bound)
        b = jax.random.uniform(kb, (fan_out,), jnp.float32, -bound, bound)
        return w, b

    k1, k2, k3, k4 = jax.random.split(key, 4)
    w1, b1 = linear(k1, INPUT_DIM, MID_DIM)     # encoder Linear(42, 21)
    w2, b2 = linear(k2, MID_DIM, LATENT_DIM)    # encoder Linear(21, 14)
    w3, b3 = linear(k3, LATENT_DIM, MID_DIM)    # decoder Linear(14, 21)
    w4, b4 = linear(k4, MID_DIM, INPUT_DIM)     # decoder Linear(21, 42)
    alpha = jnp.full((1, 1), 0.25, jnp.float32) # PReLU default init
    return dict(w1=w1, b1=b1, w2=w2, b2=b2, w3=w3, b3=b3, w4=w4, b4=b4, alpha=alpha)


def reference_forward(x, p):
    h = jnp.maximum(x @ p["w1"].T + p["b1"], 0.0)
    z = jnp.maximum(h @ p["w2"].T + p["b2"], 0.0)
    d = jnp.maximum(z @ p["w3"].T + p["b3"], 0.0)
    y = d @ p["w4"].T + p["b4"]
    a = p["alpha"][0, 0]
    return jnp.where(y > 0, y, a * y)


if __name__ == "__main__":
    key = jax.random.PRNGKey(0)
    kx, kp = jax.random.split(key)

    # Small test, chosen to exercise (a) a multi-step grid (weights reused
    # across steps) and (b) ragged-batch padding: B=300 with tile_b=128 -> 3 steps.
    B = 300
    x = jax.random.normal(kx, (B, INPUT_DIM), jnp.float32)
    params = init_params(kp)

    out = autoencoder_forward(x, params, tile_b=128)
    out = jax.block_until_ready(out)

    ref = reference_forward(x, params)
    assert out.shape == (B, INPUT_DIM)
    assert jnp.allclose(out, ref, atol=1e-4, rtol=1e-4), "mismatch vs JAX reference"

    print("KERNEL_OK")
</pallas_src>

<mosaic_0001>
module attributes {stable_mosaic.version = 11 : i64} {
  func.func @autoencoder_kernel(%arg0: i32, %arg1: memref<128x42xf32, #tpu.memory_space<vmem>>, %arg2: memref<42x21xf32, #tpu.memory_space<vmem>>, %arg3: memref<1x21xf32, #tpu.memory_space<vmem>>, %arg4: memref<21x14xf32, #tpu.memory_space<vmem>>, %arg5: memref<1x14xf32, #tpu.memory_space<vmem>>, %arg6: memref<14x21xf32, #tpu.memory_space<vmem>>, %arg7: memref<1x21xf32, #tpu.memory_space<vmem>>, %arg8: memref<21x42xf32, #tpu.memory_space<vmem>>, %arg9: memref<1x42xf32, #tpu.memory_space<vmem>>, %arg10: memref<1x1xf32, #tpu.memory_space<smem>>, %arg11: memref<128x42xf32, #tpu.memory_space<vmem>>) attributes {dimension_semantics = [#tpu.dimension_semantics<parallel>], iteration_bounds = array<i64: 3>, scalar_prefetch = 0 : i64, scratch_operands = 0 : i64, tpu.core_type = #tpu.core_type<tc>, window_params = [{transform_indices = @transform_0, window_bounds = array<i64: 128, 42>}, {pipeline_mode = #tpu.pipeline_mode<synchronous>, transform_indices = @transform_1, window_bounds = array<i64: 42, 21>}, {pipeline_mode = #tpu.pipeline_mode<synchronous>, transform_indices = @transform_2, window_bounds = array<i64: 1, 21>}, {pipeline_mode = #tpu.pipeline_mode<synchronous>, transform_indices = @transform_3, window_bounds = array<i64: 21, 14>}, {pipeline_mode = #tpu.pipeline_mode<synchronous>, transform_indices = @transform_4, window_bounds = array<i64: 1, 14>}, {pipeline_mode = #tpu.pipeline_mode<synchronous>, transform_indices = @transform_5, window_bounds = array<i64: 14, 21>}, {pipeline_mode = #tpu.pipeline_mode<synchronous>, transform_indices = @transform_6, window_bounds = array<i64: 1, 21>}, {pipeline_mode = #tpu.pipeline_mode<synchronous>, transform_indices = @transform_7, window_bounds = array<i64: 21, 42>}, {pipeline_mode = #tpu.pipeline_mode<synchronous>, transform_indices = @transform_8, window_bounds = array<i64: 1, 42>}, {transform_indices = @transform_9, window_bounds = array<i64: 1, 1>}, {transform_indices = @transform_10, window_bounds = array<i64: 128, 42>}]} {
    %c0 = arith.constant 0 : index
    %c0_0 = arith.constant 0 : index
    %0 = vector.load %arg1[%c0, %c0_0] : memref<128x42xf32, #tpu.memory_space<vmem>>, vector<128x42xf32>
    %c0_1 = arith.constant 0 : index
    %c0_2 = arith.constant 0 : index
    %1 = vector.load %arg2[%c0_1, %c0_2] : memref<42x21xf32, #tpu.memory_space<vmem>>, vector<42x21xf32>
    %cst = arith.constant dense<0.000000e+00> : vector<128x21xf32>
    %2 = tpu.matmul %0, %1, %cst {dimension_numbers = #tpu.dot_dimension_numbers<[1], [0], [0], [1], [0, 0, 1, 1], [], []>} : vector<128x42xf32>, vector<42x21xf32>, vector<128x21xf32> -> vector<128x21xf32>
    %c0_3 = arith.constant 0 : index
    %c0_4 = arith.constant 0 : index
    %3 = vector.load %arg3[%c0_3, %c0_4] : memref<1x21xf32, #tpu.memory_space<vmem>>, vector<1x21xf32>
    %4 = vector.broadcast %3 : vector<1x21xf32> to vector<128x21xf32>
    %5 = arith.addf %2, %4 : vector<128x21xf32>
    %cst_5 = arith.constant 0.000000e+00 : f32
    %6 = vector.broadcast %cst_5 : f32 to vector<128x21xf32>
    %7 = arith.maximumf %5, %6 : vector<128x21xf32>
    %c0_6 = arith.constant 0 : index
    %c0_7 = arith.constant 0 : index
    %8 = vector.load %arg4[%c0_6, %c0_7] : memref<21x14xf32, #tpu.memory_space<vmem>>, vector<21x14xf32>
    %cst_8 = arith.constant dense<0.000000e+00> : vector<128x14xf32>
    %9 = tpu.matmul %7, %8, %cst_8 {dimension_numbers = #tpu.dot_dimension_numbers<[1], [0], [0], [1], [0, 0, 1, 1], [], []>} : vector<128x21xf32>, vector<21x14xf32>, vector<128x14xf32> -> vector<128x14xf32>
    %c0_9 = arith.constant 0 : index
    %c0_10 = arith.constant 0 : index
    %10 = vector.load %arg5[%c0_9, %c0_10] : memref<1x14xf32, #tpu.memory_space<vmem>>, vector<1x14xf32>
    %11 = vector.broadcast %10 : vector<1x14xf32> to vector<128x14xf32>
    %12 = arith.addf %9, %11 : vector<128x14xf32>
    %cst_11 = arith.constant 0.000000e+00 : f32
    %13 = vector.broadcast %cst_11 : f32 to vector<128x14xf32>
    %14 = arith.maximumf %12, %13 : vector<128x14xf32>
    %c0_12 = arith.constant 0 : index
    %c0_13 = arith.constant 0 : index
    %15 = vector.load %arg6[%c0_12, %c0_13] : memref<14x21xf32, #tpu.memory_space<vmem>>, vector<14x21xf32>
    %cst_14 = arith.constant dense<0.000000e+00> : vector<128x21xf32>
    %16 = tpu.matmul %14, %15, %cst_14 {dimension_numbers = #tpu.dot_dimension_numbers<[1], [0], [0], [1], [0, 0, 1, 1], [], []>} : vector<128x14xf32>, vector<14x21xf32>, vector<128x21xf32> -> vector<128x21xf32>
    %c0_15 = arith.constant 0 : index
    %c0_16 = arith.constant 0 : index
    %17 = vector.load %arg7[%c0_15, %c0_16] : memref<1x21xf32, #tpu.memory_space<vmem>>, vector<1x21xf32>
    %18 = vector.broadcast %17 : vector<1x21xf32> to vector<128x21xf32>
    %19 = arith.addf %16, %18 : vector<128x21xf32>
    %cst_17 = arith.constant 0.000000e+00 : f32
    %20 = vector.broadcast %cst_17 : f32 to vector<128x21xf32>
    %21 = arith.maximumf %19, %20 : vector<128x21xf32>
    %c0_18 = arith.constant 0 : index
    %c0_19 = arith.constant 0 : index
    %22 = vector.load %arg8[%c0_18, %c0_19] : memref<21x42xf32, #tpu.memory_space<vmem>>, vector<21x42xf32>
    %cst_20 = arith.constant dense<0.000000e+00> : vector<128x42xf32>
    %23 = tpu.matmul %21, %22, %cst_20 {dimension_numbers = #tpu.dot_dimension_numbers<[1], [0], [0], [1], [0, 0, 1, 1], [], []>} : vector<128x21xf32>, vector<21x42xf32>, vector<128x42xf32> -> vector<128x42xf32>
    %c0_21 = arith.constant 0 : index
    %c0_22 = arith.constant 0 : index
    %24 = vector.load %arg9[%c0_21, %c0_22] : memref<1x42xf32, #tpu.memory_space<vmem>>, vector<1x42xf32>
    %25 = vector.broadcast %24 : vector<1x42xf32> to vector<128x42xf32>
    %26 = arith.addf %23, %25 : vector<128x42xf32>
    %c0_23 = arith.constant 0 : index
    %c0_24 = arith.constant 0 : index
    %27 = memref.load %arg10[%c0_23, %c0_24] : memref<1x1xf32, #tpu.memory_space<smem>>
    %cst_25 = arith.constant 0.000000e+00 : f32
    %28 = vector.broadcast %cst_25 : f32 to vector<128x42xf32>
    %29 = arith.cmpf ogt, %26, %28 : vector<128x42xf32>
    %30 = vector.broadcast %27 : f32 to vector<128x42xf32>
    %31 = arith.mulf %30, %26 : vector<128x42xf32>
    %32 = arith.select %29, %26, %31 : vector<128x42xi1>, vector<128x42xf32>
    %c0_26 = arith.constant 0 : index
    %c0_27 = arith.constant 0 : index
    %33 = vector.load %arg11[%c0_26, %c0_27] : memref<128x42xf32, #tpu.memory_space<vmem>>, vector<128x42xf32>
    tpu.vector_store %arg11[%c0_26, %c0_27], %32 {strides = array<i32>} : memref<128x42xf32, #tpu.memory_space<vmem>>, vector<128x42xf32>,
    return
  }
  func.func @transform_0(%arg0: i32) -> (i32, i32) {
    %c0_i32 = arith.constant 0 : i32
    %c0_i32_0 = arith.constant 0 : i32
    return %arg0, %c0_i32 : i32, i32
  }
  func.func @transform_1(%arg0: i32) -> (i32, i32) {
    %c0_i32 = arith.constant 0 : i32
    %c0_i32_0 = arith.constant 0 : i32
    %c0_i32_1 = arith.constant 0 : i32
    return %c0_i32, %c0_i32_0 : i32, i32
  }
  func.func @transform_2(%arg0: i32) -> (i32, i32) {
    %c0_i32 = arith.constant 0 : i32
    %c0_i32_0 = arith.constant 0 : i32
    %c0_i32_1 = arith.constant 0 : i32
    return %c0_i32, %c0_i32_0 : i32, i32
  }
  func.func @transform_3(%arg0: i32) -> (i32, i32) {
    %c0_i32 = arith.constant 0 : i32
    %c0_i32_0 = arith.constant 0 : i32
    %c0_i32_1 = arith.constant 0 : i32
    return %c0_i32, %c0_i32_0 : i32, i32
  }
  func.func @transform_4(%arg0: i32) -> (i32, i32) {
    %c0_i32 = arith.constant 0 : i32
    %c0_i32_0 = arith.constant 0 : i32
    %c0_i32_1 = arith.constant 0 : i32
    return %c0_i32, %c0_i32_0 : i32, i32
  }
  func.func @transform_5(%arg0: i32) -> (i32, i32) {
    %c0_i32 = arith.constant 0 : i32
    %c0_i32_0 = arith.constant 0 : i32
    %c0_i32_1 = arith.constant 0 : i32
    return %c0_i32, %c0_i32_0 : i32, i32
  }
  func.func @transform_6(%arg0: i32) -> (i32, i32) {
    %c0_i32 = arith.constant 0 : i32
    %c0_i32_0 = arith.constant 0 : i32
    %c0_i32_1 = arith.constant 0 : i32
    return %c0_i32, %c0_i32_0 : i32, i32
  }
  func.func @transform_7(%arg0: i32) -> (i32, i32) {
    %c0_i32 = arith.constant 0 : i32
    %c0_i32_0 = arith.constant 0 : i32
    %c0_i32_1 = arith.constant 0 : i32
    return %c0_i32, %c0_i32_0 : i32, i32
  }
  func.func @transform_8(%arg0: i32) -> (i32, i32) {
    %c0_i32 = arith.constant 0 : i32
    %c0_i32_0 = arith.constant 0 : i32
    %c0_i32_1 = arith.constant 0 : i32
    return %c0_i32, %c0_i32_0 : i32, i32
  }
  func.func @transform_9(%arg0: i32) -> (i32, i32) {
    %c0_i32 = arith.constant 0 : i32
    %c0_i32_0 = arith.constant 0 : i32
    %c0_i32_1 = arith.constant 0 : i32
    return %c0_i32, %c0_i32_0 : i32, i32
  }
  func.func @transform_10(%arg0: i32) -> (i32, i32) {
    %c0_i32 = arith.constant 0 : i32
    %c0_i32_0 = arith.constant 0 : i32
    return %arg0, %c0_i32 : i32, i32
  }
}

</mosaic_0001>

<llo_original>
// kernel: tpu_custom_call.1
$region0: #{tpu_custom_call.1}
  #allocation0 [shape = 'u32[]', space=smem, size = 0x4, offset = 0x4, fixed_abs, tag = 'smem constant byte address 0x4 - core index']
  #allocation1 [shape = 'u32[144,128]{1,0:T(1,128)}', space=vmem, size = 0x12000, scoped, tag = 'internal scratch']
  #allocation2 [shape = 'f32[1,1]{1,0:T(1,128)S(6)}', space=smem, size = 0x200, scoped, tag = 'scoped memory for tpu_custom_call.1']
  %s0 = inlined_call_operand.vmem [shape: f32[384,42], index: 0, kind: input, shape index: {}]
  %s1 = inlined_call_operand.vmem [shape: f32[42,21], index: 1, kind: input, shape index: {}]
  %s2 = inlined_call_operand.vmem [shape: f32[1,21], index: 2, kind: input, shape index: {}]
  %s3 = inlined_call_operand.vmem [shape: f32[21,14], index: 3, kind: input, shape index: {}]
  %s4 = inlined_call_operand.vmem [shape: f32[1,14], index: 4, kind: input, shape index: {}]
  %s5 = inlined_call_operand.vmem [shape: f32[14,21], index: 5, kind: input, shape index: {}]
  %s6 = inlined_call_operand.vmem [shape: f32[1,21], index: 6, kind: input, shape index: {}]
  %s7 = inlined_call_operand.vmem [shape: f32[21,42], index: 7, kind: input, shape index: {}]
  %s8 = inlined_call_operand.vmem [shape: f32[1,42], index: 8, kind: input, shape index: {}]
  %s9 = inlined_call_operand.<no memory space> [shape: f32[1,1], index: 9, kind: input, shape index: {}]
  %s10 = inlined_call_operand.vmem [shape: f32[384,42], index: 10, kind: output, shape index: {}]
  %s11 = sld [smem:[#allocation0]]
  $region73: #{tpu_custom_call.1} parent=0
    _
  %s13 = ssub.s32 1, %s11
  %s14 = scalar_select 0, %s13, %s11
  %15 = sst [smem:[#allocation2]] %s9
  loop: start=0, step=1, limit=5
  $region2: #{tpu_custom_call.1} parent=0 // loop_pre_header
    _
  $region3: #{tpu_custom_call.1} parent=0 // loop_header
    %s17 = sphi 0, %s21
    %p18 = scmp.ge.s32.totalorder %s17, 5
    %s27 = sphi 0, %s29
    %s30 = sphi 0, %s27
    %s31 = sphi 0, %s30
    %s47 = sphi 0, %s31
    %s51 = sphi 0, %s51
    %s53 = sphi 0, %s51
    %s54 = sphi 0, %s53
    %s68 = sphi 0, %s54
    %s72 = sphi 0, %s72
    %s74 = sphi 0, %s72
    %s75 = sphi 0, %s74
    %s89 = sphi 0, %s75
    %s93 = sphi 0, %s93
    %s95 = sphi 0, %s93
    %s96 = sphi 0, %s95
    %s110 = sphi 0, %s96
    %s114 = sphi 0, %s114
    %s116 = sphi 0, %s114
    %s117 = sphi 0, %s116
    %s131 = sphi 0, %s117
    %s135 = sphi 0, %s135
    %s137 = sphi 0, %s135
    %s138 = sphi 0, %s137
    %s152 = sphi 0, %s138
    %s156 = sphi 0, %s156
    %s158 = sphi 0, %s156
    %s159 = sphi 0, %s158
    %s173 = sphi 0, %s159
    %s177 = sphi 0, %s177
    %s179 = sphi 0, %s177
    %s180 = sphi 0, %s179
    %s194 = sphi 0, %s180
    %s198 = sphi 0, %s198
    %s200 = sphi 0, %s198
    %s201 = sphi 0, %s200
    %s215 = sphi 0, %s201
    %s219 = sphi 0, %s219
    %s221 = sphi 0, %s219
    %s222 = sphi 0, %s221
    %s236 = sphi 0, %s222
    %s242 = sphi 0, %s244
    %s245 = sphi 0, %s242
    %s246 = sphi 0, %s245
    %s262 = sphi 0, %s246
  $region4: #{tpu_custom_call.1} parent=0 // loop_header_branch
    %20 = sbr.rel (%p18) target = $region8
  $region5: #{tpu_custom_call.1} parent=0 // loop_body
    %s22 = ssub.s32 %s17, 1
    %s23 = ssub.s32 %s17, 2
    %s24 = sadd.s32 %s17, 1
    %s25 = ssub.s32 %s17, %s24
    %p26 = scmp.eq.s32.totalorder %s25, 0
    %s28 = sadd.s32 %s27, 1
    %s29 = scalar_select %p26, %s27, %s28
    %p32 = pneg %p26
    %p33 = scmp.eq.s32.totalorder %s17, 2
    %p34 = por %p32, %p33
    %p35 = scmp.ne.s32.totalorder %s27, %s30
    %p36 = scmp.eq.s32.totalorder %s17, 0
    %p37 = por %p35, %p36
    %p38 = scmp.ne.s32.totalorder %s27, %s30
    %p39 = scmp.eq.s32.totalorder %s22, 2
    %p40 = por %p38, %p39
    %p41 = scmp.ne.s32.totalorder %s30, %s31
    %p42 = scmp.eq.s32.totalorder %s22, 0
    %p43 = por %p41, %p42
    %p44 = scmp.ne.s32.totalorder %s30, %s31
    %p45 = scmp.eq.s32.totalorder %s23, 2
    %p46 = por %p44, %p45
    %p48 = scmp.ne.s32.totalorder %s31, %s47
    %p49 = scmp.eq.s32.totalorder %s23, 0
    %p50 = por %p48, %p49
    %s52 = sadd.s32 %s51, 1
    %p55 = scmp.eq.s32.totalorder %s17, 2
    %p56 = scmp.ne.s32.totalorder %s51, %s53
    %p57 = scmp.eq.s32.totalorder %s17, 0
    %p58 = por %p56, %p57
    %p59 = scmp.ne.s32.totalorder %s51, %s53
    %p60 = scmp.eq.s32.totalorder %s22, 2
    %p61 = por %p59, %p60
    %p62 = scmp.ne.s32.totalorder %s53, %s54
    %p63 = scmp.eq.s32.totalorder %s22, 0
    %p64 = por %p62, %p63
    %p65 = scmp.ne.s32.totalorder %s53, %s54
    %p66 = scmp.eq.s32.totalorder %s23, 2
    %p67 = por %p65, %p66
    %p69 = scmp.ne.s32.totalorder %s54, %s68
    %p70 = scmp.eq.s32.totalorder %s23, 0
    %p71 = por %p69, %p70
    %s73 = sadd.s32 %s72, 1
    %p76 = scmp.eq.s32.totalorder %s17, 2
    %p77 = scmp.ne.s32.totalorder %s72, %s74
    %p78 = scmp.eq.s32.totalorder %s17, 0
    %p79 = por %p77, %p78
    %p80 = scmp.ne.s32.totalorder %s72, %s74
    %p81 = scmp.eq.s32.totalorder %s22, 2
    %p82 = por %p80, %p81
    %p83 = scmp.ne.s32.totalorder %s74, %s75
    %p84 = scmp.eq.s32.totalorder %s22, 0
    %p85 = por %p83, %p84
    %p86 = scmp.ne.s32.totalorder %s74, %s75
    %p87 = scmp.eq.s32.totalorder %s23, 2
    %p88 = por %p86, %p87
    %p90 = scmp.ne.s32.totalorder %s75, %s89
    %p91 = scmp.eq.s32.totalorder %s23, 0
    %p92 = por %p90, %p91
    %s94 = sadd.s32 %s93, 1
    %p97 = scmp.eq.s32.totalorder %s17, 2
    %p98 = scmp.ne.s32.totalorder %s93, %s95
    %p99 = scmp.eq.s32.totalorder %s17, 0
    %p100 = por %p98, %p99
    %p101 = scmp.ne.s32.totalorder %s93, %s95
    %p102 = scmp.eq.s32.totalorder %s22, 2
    %p103 = por %p101, %p102
    %p104 = scmp.ne.s32.totalorder %s95, %s96
    %p105 = scmp.eq.s32.totalorder %s22, 0
    %p106 = por %p104, %p105
    %p107 = scmp.ne.s32.totalorder %s95, %s96
    %p108 = scmp.eq.s32.totalorder %s23, 2
    %p109 = por %p107, %p108
    %p111 = scmp.ne.s32.totalorder %s96, %s110
    %p112 = scmp.eq.s32.totalorder %s23, 0
    %p113 = por %p111, %p112
    %s115 = sadd.s32 %s114, 1
    %p118 = scmp.eq.s32.totalorder %s17, 2
    %p119 = scmp.ne.s32.totalorder %s114, %s116
    %p120 = scmp.eq.s32.totalorder %s17, 0
    %p121 = por %p119, %p120
    %p122 = scmp.ne.s32.totalorder %s114, %s116
    %p123 = scmp.eq.s32.totalorder %s22, 2
    %p124 = por %p122, %p123
    %p125 = scmp.ne.s32.totalorder %s116, %s117
    %p126 = scmp.eq.s32.totalorder %s22, 0
    %p127 = por %p125, %p126
    %p128 = scmp.ne.s32.totalorder %s116, %s117
    %p129 = scmp.eq.s32.totalorder %s23, 2
    %p130 = por %p128, %p129
    %p132 = scmp.ne.s32.totalorder %s117, %s131
    %p133 = scmp.eq.s32.totalorder %s23, 0
    %p134 = por %p132, %p133
    %s136 = sadd.s32 %s135, 1
    %p139 = scmp.eq.s32.totalorder %s17, 2
    %p140 = scmp.ne.s32.totalorder %s135, %s137
    %p141 = scmp.eq.s32.totalorder %s17, 0
    %p142 = por %p140, %p141
    %p143 = scmp.ne.s32.totalorder %s135, %s137
    %p144 = scmp.eq.s32.totalorder %s22, 2
    %p145 = por %p143, %p144
    %p146 = scmp.ne.s32.totalorder %s137, %s138
    %p147 = scmp.eq.s32.totalorder %s22, 0
    %p148 = por %p146, %p147
    %p149 = scmp.ne.s32.totalorder %s137, %s138
    %p150 = scmp.eq.s32.totalorder %s23, 2
    %p151 = por %p149, %p150
    %p153 = scmp.ne.s32.totalorder %s138, %s152
    %p154 = scmp.eq.s32.totalorder %s23, 0
    %p155 = por %p153, %p154
    %s157 = sadd.s32 %s156, 1
    %p160 = scmp.eq.s32.totalorder %s17, 2
    %p161 = scmp.ne.s32.totalorder %s156, %s158
    %p162 = scmp.eq.s32.totalorder %s17, 0
    %p163 = por %p161, %p162
    %p164 = scmp.ne.s32.totalorder %s156, %s158
    %p165 = scmp.eq.s32.totalorder %s22, 2
    %p166 = por %p164, %p165
    %p167 = scmp.ne.s32.totalorder %s158, %s159
    %p168 = scmp.eq.s32.totalorder %s22, 0
    %p169 = por %p167, %p168
    %p170 = scmp.ne.s32.totalorder %s158, %s159
    %p171 = scmp.eq.s32.totalorder %s23, 2
    %p172 = por %p170, %p171
    %p174 = scmp.ne.s32.totalorder %s159, %s173
    %p175 = scmp.eq.s32.totalorder %s23, 0
    %p176 = por %p174, %p175
    %s178 = sadd.s32 %s177, 1
    %p181 = scmp.eq.s32.totalorder %s17, 2
    %p182 = scmp.ne.s32.totalorder %s177, %s179
    %p183 = scmp.eq.s32.totalorder %s17, 0
    %p184 = por %p182, %p183
    %p185 = scmp.ne.s32.totalorder %s177, %s179
    %p186 = scmp.eq.s32.totalorder %s22, 2
    %p187 = por %p185, %p186
    %p188 = scmp.ne.s32.totalorder %s179, %s180
    %p189 = scmp.eq.s32.totalorder %s22, 0
    %p190 = por %p188, %p189
    %p191 = scmp.ne.s32.totalorder %s179, %s180
    %p192 = scmp.eq.s32.totalorder %s23, 2
    %p193 = por %p191, %p192
    %p195 = scmp.ne.s32.totalorder %s180, %s194
    %p196 = scmp.eq.s32.totalorder %s23, 0
    %p197 = por %p195, %p196
    %s199 = sadd.s32 %s198, 1
    %p202 = scmp.eq.s32.totalorder %s17, 2
    %p203 = scmp.ne.s32.totalorder %s198, %s200
    %p204 = scmp.eq.s32.totalorder %s17, 0
    %p205 = por %p203, %p204
    %p206 = scmp.ne.s32.totalorder %s198, %s200
    %p207 = scmp.eq.s32.totalorder %s22, 2
    %p208 = por %p206, %p207
    %p209 = scmp.ne.s32.totalorder %s200, %s201
    %p210 = scmp.eq.s32.totalorder %s22, 0
    %p211 = por %p209, %p210
    %p212 = scmp.ne.s32.totalorder %s200, %s201
    %p213 = scmp.eq.s32.totalorder %s23, 2
    %p214 = por %p212, %p213
    %p216 = scmp.ne.s32.totalorder %s201, %s215
    %p217 = scmp.eq.s32.totalorder %s23, 0
    %p218 = por %p216, %p217
    %s220 = sadd.s32 %s219, 1
    %p223 = scmp.eq.s32.totalorder %s17, 2
    %p224 = scmp.ne.s32.totalorder %s219, %s221
    %p225 = scmp.eq.s32.totalorder %s17, 0
    %p226 = por %p224, %p225
    %p227 = scmp.ne.s32.totalorder %s219, %s221
    %p228 = scmp.eq.s32.totalorder %s22, 2
    %p229 = por %p227, %p228
    %p230 = scmp.ne.s32.totalorder %s221, %s222
    %p231 = scmp.eq.s32.totalorder %s22, 0
    %p232 = por %p230, %p231
    %p233 = scmp.ne.s32.totalorder %s221, %s222
    %p234 = scmp.eq.s32.totalorder %s23, 2
    %p235 = por %p233, %p234
    %p237 = scmp.ne.s32.totalorder %s222, %s236
    %p238 = scmp.eq.s32.totalorder %s23, 0
    %p239 = por %p237, %p238
    %s240 = ssub.s32 %s17, %s24
    %p241 = scmp.eq.s32.totalorder %s240, 0
    %s243 = sadd.s32 %s242, 1
    %s244 = scalar_select %p241, %s242, %s243
    %p247 = pneg %p241
    %p248 = scmp.eq.s32.totalorder %s17, 2
    %p249 = por %p247, %p248
    %p250 = scmp.ne.s32.totalorder %s242, %s245
    %p251 = scmp.eq.s32.totalorder %s17, 0
    %p252 = por %p250, %p251
    %p253 = scmp.ne.s32.totalorder %s242, %s245
    %p254 = scmp.eq.s32.totalorder %s22, 2
    %p255 = por %p253, %p254
    %p256 = scmp.ne.s32.totalorder %s245, %s246
    %p257 = scmp.eq.s32.totalorder %s22, 0
    %p258 = por %p256, %p257
    %p259 = scmp.ne.s32.totalorder %s245, %s246
    %p260 = scmp.eq.s32.totalorder %s23, 2
    %p261 = por %p259, %p260
    %p263 = scmp.ne.s32.totalorder %s246, %s262
    %p264 = scmp.eq.s32.totalorder %s23, 0
    %p265 = por %p263, %p264
    %p266 = scmp.le.s32.totalorder 1, %s17
    %p267 = scmp.lt.s32.totalorder %s17, 4
    %p268 = pnand %p266, %p267
    %p269 = pneg %p268
    // Predicated region
    $region9: #{tpu_custom_call.1} parent=5 // pred_check
      _
    $region10: #{tpu_custom_call.1} parent=5 // pred_check_branch
      %271 = sbr.rel (%p268) target = $region12
    $region11: #{tpu_custom_call.1} parent=5 // pred_region
      %s272 = ssub.s32 %s17, 1
      // Predicated region
      $region13: #{tpu_custom_call.1} parent=11 // pred_check
        %p273 = pneg %p64
      $region14: #{tpu_custom_call.1} parent=11 // pred_check_branch
        %275 = sbr.rel (%p273) target = $region16
      $region15: #{tpu_custom_call.1} parent=11 // pred_region
        _
      $region16: #{tpu_custom_call.1} parent=11 // pred_fallthru
        _
      // Predicated region
      $region17: #{tpu_custom_call.1} parent=11 // pred_check
        %p276 = pneg %p85
      $region18: #{tpu_custom_call.1} parent=11 // pred_check_branch
        %278 = sbr.rel (%p276) target = $region20
      $region19: #{tpu_custom_call.1} parent=11 // pred_region
        _
      $region20: #{tpu_custom_call.1} parent=11 // pred_fallthru
        _
      // Predicated region
      $region21: #{tpu_custom_call.1} parent=11 // pred_check
        %p279 = pneg %p106
      $region22: #{tpu_custom_call.1} parent=11 // pred_check_branch
        %281 = sbr.rel (%p279) target = $region24
      $region23: #{tpu_custom_call.1} parent=11 // pred_region
        _
      $region24: #{tpu_custom_call.1} parent=11 // pred_fallthru
        _
      // Predicated region
      $region25: #{tpu_custom_call.1} parent=11 // pred_check
        %p282 = pneg %p127
      $region26: #{tpu_custom_call.1} parent=11 // pred_check_branch
        %284 = sbr.rel (%p282) target = $region28
      $region27: #{tpu_custom_call.1} parent=11 // pred_region
        _
      $region28: #{tpu_custom_call.1} parent=11 // pred_fallthru
        _
      // Predicated region
      $region29: #{tpu_custom_call.1} parent=11 // pred_check
        %p285 = pneg %p148
      $region30: #{tpu_custom_call.1} parent=11 // pred_check_branch
        %287 = sbr.rel (%p285) target = $region32
      $region31: #{tpu_custom_call.1} parent=11 // pred_region
        _
      $region32: #{tpu_custom_call.1} parent=11 // pred_fallthru
        _
      // Predicated region
      $region33: #{tpu_custom_call.1} parent=11 // pred_check
        %p288 = pneg %p169
      $region34: #{tpu_custom_call.1} parent=11 // pred_check_branch
        %290 = sbr.rel (%p288) target = $region36
      $region35: #{tpu_custom_call.1} parent=11 // pred_region
        _
      $region36: #{tpu_custom_call.1} parent=11 // pred_fallthru
        _
      // Predicated region
      $region37: #{tpu_custom_call.1} parent=11 // pred_check
        %p291 = pneg %p190
      $region38: #{tpu_custom_call.1} parent=11 // pred_check_branch
        %293 = sbr.rel (%p291) target = $region40
      $region39: #{tpu_custom_call.1} parent=11 // pred_region
        _
      $region40: #{tpu_custom_call.1} parent=11 // pred_fallthru
        _
      // Predicated region
      $region41: #{tpu_custom_call.1} parent=11 // pred_check
        %p294 = pneg %p211
      $region42: #{tpu_custom_call.1} parent=11 // pred_check_branch
        %296 = sbr.rel (%p294) target = $region44
      $region43: #{tpu_custom_call.1} parent=11 // pred_region
        _
      $region44: #{tpu_custom_call.1} parent=11 // pred_fallthru
        _
      // Predicated region
      $region45: #{tpu_custom_call.1} parent=11 // pred_check
        %p297 = pneg %p232
      $region46: #{tpu_custom_call.1} parent=11 // pred_check_branch
        %299 = sbr.rel (%p297) target = $region48
      $region47: #{tpu_custom_call.1} parent=11 // pred_region
        _
      $region48: #{tpu_custom_call.1} parent=11 // pred_fallthru
        _
    $region12: #{tpu_custom_call.1} parent=5 // pred_fallthru
      _
    %p300 = scmp.lt.s32.totalorder %s17, 3
    // Predicated region
    $region49: #{tpu_custom_call.1} parent=5 // pred_check
      %p301 = pneg %p300
    $region50: #{tpu_custom_call.1} parent=5 // pred_check_branch
      %303 = sbr.rel (%p301) target = $region52
    $region51: #{tpu_custom_call.1} parent=5 // pred_region
      // Predicated region
      $region53: #{tpu_custom_call.1} parent=51 // pred_check
        %p304 = pneg %p37
      $region54: #{tpu_custom_call.1} parent=51 // pred_check_branch
        %306 = sbr.rel (%p304) target = $region56
      $region55: #{tpu_custom_call.1} parent=51 // pred_region
        %s307 = smul.u32 16, %s17
        %p308 = scmp.lt.s32.totalorder %s307, 47
        %s309 = scalar_select %p308, %s307, 47
        %s310 = smul.addr %s309, 8
        %s311 = scalar_lea.vmem %s0, %s310
        %s312 = smul.u32 16, %s17
      $region56: #{tpu_custom_call.1} parent=51 // pred_fallthru
        _
    $region52: #{tpu_custom_call.1} parent=5 // pred_fallthru
      _
    %p313 = scmp.le.s32.totalorder 1, %s17
    %p314 = scmp.lt.s32.totalorder %s17, 4
    %p315 = pnand %p313, %p314
    %p316 = pneg %p315
    // Predicated region
    $region57: #{tpu_custom_call.1} parent=5 // pred_check
      _
    $region58: #{tpu_custom_call.1} parent=5 // pred_check_branch
      %318 = sbr.rel (%p315) target = $region60
    $region59: #{tpu_custom_call.1} parent=5 // pred_region
      %s319 = ssub.s32 %s17, 1
      %s320 = smul.u32 16, %s22
      %p321 = scmp.lt.s32.totalorder %s320, 47
      %s322 = scalar_select %p321, %s320, 47
      %s323 = smul.addr %s322, 8
      %s324 = scalar_lea.vmem %s0, %s323
      %p325 = pneg %p43
      %p326 = pneg %p40
      %p327 = pneg %p64
      %p328 = pneg %p61
      %p329 = pneg %p85
      %p330 = pneg %p82
      %p331 = pneg %p106
      %p332 = pneg %p103
      %p333 = pneg %p127
      %p334 = pneg %p124
      %p335 = pneg %p148
      %p336 = pneg %p145
      %p337 = pneg %p169
      %p338 = pneg %p166
      %p339 = pneg %p190
      %p340 = pneg %p187
      %p341 = pneg %p211
      %p342 = pneg %p208
      %p343 = pneg %p232
      %p344 = pneg %p229
      %p345 = pneg %p258
      %p346 = pneg %p255
      %s347 = smul.u32 16, %s22
      %p348 = scmp.lt.s32.totalorder %s347, 47
      %s349 = scalar_select %p348, %s347, 47
      %s350 = smul.addr %s349, 8
      %s351 = scalar_lea.vmem %s10, %s350
      %s352 = smul.u32 16, %s22
      %p353 = scmp.lt.s32.totalorder %s352, 47
      %s354 = scalar_select %p353, %s352, 47
      %s355 = smul.addr %s354, 8
      %s356 = scalar_lea.vmem %s0, %s355
      %s357 = smul.u32 16, %s22
      %s358 = smul.u32 16, %s22
      %p359 = scmp.lt.s32.totalorder %s358, 47
      %s360 = scalar_select %p359, %s358, 47
      %s361 = smul.addr %s360, 8
      %s362 = scalar_lea.vmem %s10, %s361
      %s363 = smul.u32 16, %s22
      %v364 = vld [vmem:[%s356] sm:$0xff]
      %v365 = vld [vmem:[%s356 + $0x8] sm:$0xff]
      %v366 = vld [vmem:[%s356 + $0x10] sm:$0xff]
      %v367 = vld [vmem:[%s356 + $0x18] sm:$0xff]
      %v368 = vld [vmem:[%s356 + $0x20] sm:$0xff]
      %v369 = vld [vmem:[%s356 + $0x28] sm:$0xff]
      %v370 = vld [vmem:[%s356 + $0x30] sm:$0xff]
      %v371 = vld [vmem:[%s356 + $0x38] sm:$0xff]
      %v372 = vld [vmem:[%s356 + $0x40] sm:$0xff]
      %v373 = vld [vmem:[%s356 + $0x48] sm:$0xff]
      %v374 = vld [vmem:[%s356 + $0x50] sm:$0xff]
      %v375 = vld [vmem:[%s356 + $0x58] sm:$0xff]
      %v376 = vld [vmem:[%s356 + $0x60] sm:$0xff]
      %v377 = vld [vmem:[%s356 + $0x68] sm:$0xff]
      %v378 = vld [vmem:[%s356 + $0x70] sm:$0xff]
      %v379 = vld [vmem:[%s356 + $0x78] sm:$0xff]
      %v380 = vld [vmem:[%s1] sm:$0xff]
      %v381 = vld [vmem:[%s1 + $0x8] sm:$0xff]
      %v382 = vld [vmem:[%s1 + $0x10] sm:$0xff]
      %v383 = vld [vmem:[%s1 + $0x18] sm:$0xff]
      %v384 = vld [vmem:[%s1 + $0x20] sm:$0xff]
      %v385 = vld [vmem:[%s1 + $0x28] sm:$0x3]
      %v386 = vld [vmem:[%s2] sm:$0x1]
      %v388 = vlaneseq
      %v389 = vshrl.u32 %v388, 7
      %v390 = vsub.s32 0, %v389
      %v391 = vrot.slane %v386, %v390
      %vm393 = vcmask 343040
      %v395 = vsel %vm393, %v364, 0
      %v398 = vsel %vm393, %v365, 0
      %v401 = vsel %vm393, %v366, 0
      %v404 = vsel %vm393, %v367, 0
      %v407 = vsel %vm393, %v368, 0
      %v410 = vsel %vm393, %v369, 0
      %v413 = vsel %vm393, %v370, 0
      %v416 = vsel %vm393, %v371, 0
      %v419 = vsel %vm393, %v372, 0
      %v422 = vsel %vm393, %v373, 0
      %v425 = vsel %vm393, %v374, 0
      %v428 = vsel %vm393, %v375, 0
      %v431 = vsel %vm393, %v376, 0
      %v434 = vsel %vm393, %v377, 0
      %v437 = vsel %vm393, %v378, 0
      %v440 = vsel %vm393, %v379, 0
      %vm442 = vcmask 1041408
      %v444 = vsel %vm442, %v385, 0
      %446 = vmatprep.subr.mxu0 0.0
      %447 = vmatpush1.msra.mxu0 %v380
      %448 = vmatprep.subr.mxu0 0.0
      %449 = vmatpush1.msra.mxu0 %v381
      %450 = vmatprep.subr.mxu0 0.0
      %451 = vmatpush1.msra.mxu0 %v382
      %452 = vmatprep.subr.mxu0 0.0
      %453 = vmatpush1.msra.mxu0 %v383
      %454 = vmatprep.subr.mxu0 0.0
      %455 = vmatpush1.msra.mxu0 %v384
      %456 = vmatprep.subr.mxu0 0.0
      %457 = vmatpush1.msra.mxu0 %v444
      %458 = vmatprep.subr.mxu0 0.0
      %459 = vmatpush1.msra.mxu0 0.0
      %460 = vmatprep.subr.mxu0 0.0
      %461 = vmatpush1.msra.mxu0 0.0
      %462 = vmatprep.subr.mxu0 0.0
      %463 = vmatpush1.msra.mxu0 0.0
      %464 = vmatprep.subr.mxu0 0.0
      %465 = vmatpush1.msra.mxu0 0.0
      %466 = vmatprep.subr.mxu0 0.0
      %467 = vmatpush1.msra.mxu0 0.0
      %468 = vmatprep.subr.mxu0 0.0
      %469 = vmatpush1.msra.mxu0 0.0
      %470 = vmatprep.subr.mxu0 0.0
      %471 = vmatpush1.msra.mxu0 0.0
      %472 = vmatprep.subr.mxu0 0.0
      %473 = vmatpush1.msra.mxu0 0.0
      %474 = vmatprep.subr.mxu0 0.0
      %475 = vmatpush1.msra.mxu0 0.0
      %476 = vmatprep.subr.mxu0 0.0
      %477 = vmatpush1.msra.mxu0 0.0
      %478 = vmatprep.subr.mxu0 0.0
      %479 = vmatpush1.msra.mxu0 0.0
      %480 = vmatprep.subr.mxu0 0.0
      %481 = vmatpush1.msra.mxu0 0.0
      %482 = vmatprep.subr.mxu0 0.0
      %483 = vmatpush1.msra.mxu0 0.0
      %484 = vmatprep.subr.mxu0 0.0
      %485 = vmatpush1.msra.mxu0 0.0
      %486 = vmatprep.subr.mxu0 0.0
      %487 = vmatpush1.msra.mxu0 0.0
      %488 = vmatprep.subr.mxu0 0.0
      %489 = vmatpush1.msra.mxu0 0.0
      %490 = vmatprep.subr.mxu0 0.0
      %491 = vmatpush1.msra.mxu0 0.0
      %492 = vmatprep.subr.mxu0 0.0
      %493 = vmatpush1.msra.mxu0 0.0
      %494 = vmatprep.subr.mxu0 0.0
      %495 = vmatpush1.msra.mxu0 0.0
      %496 = vmatprep.subr.mxu0 0.0
      %497 = vmatpush1.msra.mxu0 0.0
      %498 = vmatprep.subr.mxu0 0.0
      %499 = vmatpush1.msra.mxu0 0.0
      %500 = vmatprep.subr.mxu0 0.0
      %501 = vmatpush1.msra.mxu0 0.0
      %502 = vmatprep.subr.mxu0 0.0
      %503 = vmatpush1.msra.mxu0 0.0
      %504 = vmatprep.subr.mxu0 0.0
      %505 = vmatpush1.msra.mxu0 0.0
      %506 = vmatprep.subr.mxu0 0.0
      %507 = vmatpush1.msra.mxu0 0.0
      %508 = vmatprep.subr.mxu0 0.0
      %509 = vmatpush1.msra.mxu0 0.0
      %510 = vmatprep.mubr.f32.mxu0 0.0
      %511 = vmatmul.mubr.f32.gmra.mrb[0].mxu0 %v395
      %v512 = vpop.f32.mrb[0].mxu0
      %v513 = vadd.f32 %v391, %v512
      %v514 = vpop.f32.mrb[0].mxu0
      %515 = vmatprep.mubr.f32.mxu0 0.0
      %516 = vmatmul.mubr.f32.gmra.mrb[0].mxu0 %v398
      %v517 = vpop.f32.mrb[0].mxu0
      %v518 = vadd.f32 %v391, %v517
      %v519 = vpop.f32.mrb[0].mxu0
      %520 = vmatprep.mubr.f32.mxu0 0.0
      %521 = vmatmul.mubr.f32.gmra.mrb[0].mxu0 %v401
      %v522 = vpop.f32.mrb[0].mxu0
      %v523 = vadd.f32 %v391, %v522
      %v524 = vpop.f32.mrb[0].mxu0
      %525 = vmatprep.mubr.f32.mxu0 0.0
      %526 = vmatmul.mubr.f32.gmra.mrb[0].mxu0 %v404
      %v527 = vpop.f32.mrb[0].mxu0
      %v528 = vadd.f32 %v391, %v527
      %v529 = vpop.f32.mrb[0].mxu0
      %530 = vmatprep.mubr.f32.mxu0 0.0
      %531 = vmatmul.mubr.f32.gmra.mrb[0].mxu0 %v407
      %v532 = vpop.f32.mrb[0].mxu0
      %v533 = vadd.f32 %v391, %v532
      %v534 = vpop.f32.mrb[0].mxu0
      %535 = vmatprep.mubr.f32.mxu0 0.0
      %536 = vmatmul.mubr.f32.gmra.mrb[0].mxu0 %v410
      %v537 = vpop.f32.mrb[0].mxu0
      %v538 = vadd.f32 %v391, %v537
      %v539 = vpop.f32.mrb[0].mxu0
      %540 = vmatprep.mubr.f32.mxu0 0.0
      %541 = vmatmul.mubr.f32.gmra.mrb[0].mxu0 %v413
      %v542 = vpop.f32.mrb[0].mxu0
      %v543 = vadd.f32 %v391, %v542
      %v544 = vpop.f32.mrb[0].mxu0
      %545 = vmatprep.mubr.f32.mxu0 0.0
      %546 = vmatmul.mubr.f32.gmra.mrb[0].mxu0 %v416
      %v547 = vpop.f32.mrb[0].mxu0
      %v548 = vadd.f32 %v391, %v547
      %v549 = vpop.f32.mrb[0].mxu0
      %550 = vmatprep.mubr.f32.mxu0 0.0
      %551 = vmatmul.mubr.f32.gmra.mrb[0].mxu0 %v419
      %v552 = vpop.f32.mrb[0].mxu0
      %v553 = vadd.f32 %v391, %v552
      %v554 = vpop.f32.mrb[0].mxu0
      %555 = vmatprep.mubr.f32.mxu0 0.0
      %556 = vmatmul.mubr.f32.gmra.mrb[0].mxu0 %v422
      %v557 = vpop.f32.mrb[0].mxu0
      %v558 = vadd.f32 %v391, %v557
      %v559 = vpop.f32.mrb[0].mxu0
      %560 = vmatprep.mubr.f32.mxu0 0.0
      %561 = vmatmul.mubr.f32.gmra.mrb[0].mxu0 %v425
      %v562 = vpop.f32.mrb[0].mxu0
      %v563 = vadd.f32 %v391, %v562
      %v564 = vpop.f32.mrb[0].mxu0
      %565 = vmatprep.mubr.f32.mxu0 0.0
      %566 = vmatmul.mubr.f32.gmra.mrb[0].mxu0 %v428
      %v567 = vpop.f32.mrb[0].mxu0
      %v568 = vadd.f32 %v391, %v567
      %v569 = vpop.f32.mrb[0].mxu0
      %570 = vmatprep.mubr.f32.mxu0 0.0
      %571 = vmatmul.mubr.f32.gmra.mrb[0].mxu0 %v431
      %v572 = vpop.f32.mrb[0].mxu0
      %v573 = vadd.f32 %v391, %v572
      %v574 = vpop.f32.mrb[0].mxu0
      %575 = vmatprep.mubr.f32.mxu0 0.0
      %576 = vmatmul.mubr.f32.gmra.mrb[0].mxu0 %v434
      %v577 = vpop.f32.mrb[0].mxu0
      %v578 = vadd.f32 %v391, %v577
      %v579 = vpop.f32.mrb[0].mxu0
      %580 = vmatprep.mubr.f32.mxu0 0.0
      %581 = vmatmul.mubr.f32.gmra.mrb[0].mxu0 %v437
      %v582 = vpop.f32.mrb[0].mxu0
      %v583 = vadd.f32 %v391, %v582
      %v584 = vpop.f32.mrb[0].mxu0
      %585 = vmatprep.mubr.f32.mxu0 0.0
      %586 = vmatmul.mubr.f32.gmra.mrb[0].mxu0 %v440
      %v587 = vpop.f32.mrb[0].mxu0
      %v588 = vadd.f32 %v391, %v587
      %v589 = vpop.f32.mrb[0].mxu0
      %590 = vdwg.mxu0
      %v591 = vmax.f32 %v513, 0.0
      %v592 = vmax.f32 %v518, 0.0
      %v593 = vmax.f32 %v523, 0.0
      %v594 = vmax.f32 %v528, 0.0
      %v595 = vmax.f32 %v533, 0.0
      %v596 = vmax.f32 %v538, 0.0
      %v597 = vmax.f32 %v543, 0.0
      %v598 = vmax.f32 %v548, 0.0
      %v599 = vmax.f32 %v553, 0.0
      %v600 = vmax.f32 %v558, 0.0
      %v601 = vmax.f32 %v563, 0.0
      %v602 = vmax.f32 %v568, 0.0
      %v603 = vmax.f32 %v573, 0.0
      %v604 = vmax.f32 %v578, 0.0
      %v605 = vmax.f32 %v583, 0.0
      %v606 = vmax.f32 %v588, 0.0
      %v607 = vld [vmem:[%s3] sm:$0xff]
      %v608 = vld [vmem:[%s3 + $0x8] sm:$0xff]
      %v609 = vld [vmem:[%s3 + $0x10] sm:$0x1f]
      %v610 = vld [vmem:[%s4] sm:$0x1]
      %v612 = vlaneseq
      %v613 = vshrl.u32 %v612, 7
      %v614 = vsub.s32 0, %v613
      %v615 = vrot.slane %v610, %v614
      %vm617 = vcmask 171008
      %v619 = vsel %vm617, %v591, 0
      %v622 = vsel %vm617, %v592, 0
      %v625 = vsel %vm617, %v593, 0
      %v628 = vsel %vm617, %v594, 0
      %v631 = vsel %vm617, %v595, 0
      %v634 = vsel %vm617, %v596, 0
      %v637 = vsel %vm617, %v597, 0
      %v640 = vsel %vm617, %v598, 0
      %v643 = vsel %vm617, %v599, 0
      %v646 = vsel %vm617, %v600, 0
      %v649 = vsel %vm617, %v601, 0
      %v652 = vsel %vm617, %v602, 0
      %v655 = vsel %vm617, %v603, 0
      %v658 = vsel %vm617, %v604, 0
      %v661 = vsel %vm617, %v605, 0
      %v664 = vsel %vm617, %v606, 0
      %vm666 = vcmask 1044480
      %v668 = vsel %vm666, %v609, 0
      %670 = vmatprep.subr.mxu0 0.0
      %671 = vmatpush1.msra.mxu0 %v607
      %672 = vmatprep.subr.mxu0 0.0
      %673 = vmatpush1.msra.mxu0 %v608
      %674 = vmatprep.subr.mxu0 0.0
      %675 = vmatpush1.msra.mxu0 %v668
      %676 = vmatprep.subr.mxu0 0.0
      %677 = vmatpush1.msra.mxu0 0.0
      %678 = vmatprep.subr.mxu0 0.0
      %679 = vmatpush1.msra.mxu0 0.0
      %680 = vmatprep.subr.mxu0 0.0
      %681 = vmatpush1.msra.mxu0 0.0
      %682 = vmatprep.subr.mxu0 0.0
      %683 = vmatpush1.msra.mxu0 0.0
      %684 = vmatprep.subr.mxu0 0.0
      %685 = vmatpush1.msra.mxu0 0.0
      %686 = vmatprep.subr.mxu0 0.0
      %687 = vmatpush1.msra.mxu0 0.0
      %688 = vmatprep.subr.mxu0 0.0
      %689 = vmatpush1.msra.mxu0 0.0
      %690 = vmatprep.subr.mxu0 0.0
      %691 = vmatpush1.msra.mxu0 0.0
      %692 = vmatprep.subr.mxu0 0.0
      %693 = vmatpush1.msra.mxu0 0.0
      %694 = vmatprep.subr.mxu0 0.0
      %695 = vmatpush1.msra.mxu0 0.0
      %696 = vmatprep.subr.mxu0 0.0
      %697 = vmatpush1.msra.mxu0 0.0
      %698 = vmatprep.subr.mxu0 0.0
      %699 = vmatpush1.msra.mxu0 0.0
      %700 = vmatprep.subr.mxu0 0.0
      %701 = vmatpush1.msra.mxu0 0.0
      %702 = vmatprep.subr.mxu0 0.0
      %703 = vmatpush1.msra.mxu0 0.0
      %704 = vmatprep.subr.mxu0 0.0
      %705 = vmatpush1.msra.mxu0 0.0
      %706 = vmatprep.subr.mxu0 0.0
      %707 = vmatpush1.msra.mxu0 0.0
      %708 = vmatprep.subr.mxu0 0.0
      %709 = vmatpush1.msra.mxu0 0.0
      %710 = vmatprep.subr.mxu0 0.0
      %711 = vmatpush1.msra.mxu0 0.0
      %712 = vmatprep.subr.mxu0 0.0
      %713 = vmatpush1.msra.mxu0 0.0
      %714 = vmatprep.subr.mxu0 0.0
      %715 = vmatpush1.msra.mxu0 0.0
      %716 = vmatprep.subr.mxu0 0.0
      %717 = vmatpush1.msra.mxu0 0.0
      %718 = vmatprep.subr.mxu0 0.0
      %719 = vmatpush1.msra.mxu0 0.0
      %720 = vmatprep.subr.mxu0 0.0
      %721 = vmatpush1.msra.mxu0 0.0
      %722 = vmatprep.subr.mxu0 0.0
      %723 = vmatpush1.msra.mxu0 0.0
      %724 = vmatprep.subr.mxu0 0.0
      %725 = vmatpush1.msra.mxu0 0.0
      %726 = vmatprep.subr.mxu0 0.0
      %727 = vmatpush1.msra.mxu0 0.0
      %728 = vmatprep.subr.mxu0 0.0
      %729 = vmatpush1.msra.mxu0 0.0
      %730 = vmatprep.subr.mxu0 0.0
      %731 = vmatpush1.msra.mxu0 0.0
      %732 = vmatprep.subr.mxu0 0.0
      %733 = vmatpush1.msra.mxu0 0.0
      %734 = vmatprep.mubr.f32.mxu0 0.0
      %735 = vmatmul.mubr.f32.gmra.mrb[0].mxu0 %v619
      %v736 = vpop.f32.mrb[0].mxu0
      %v737 = vadd.f32 %v615, %v736
      %v738 = vpop.f32.mrb[0].mxu0
      %739 = vmatprep.mubr.f32.mxu0 0.0
      %740 = vmatmul.mubr.f32.gmra.mrb[0].mxu0 %v622
      %v741 = vpop.f32.mrb[0].mxu0
      %v742 = vadd.f32 %v615, %v741
      %v743 = vpop.f32.mrb[0].mxu0
      %744 = vmatprep.mubr.f32.mxu0 0.0
      %745 = vmatmul.mubr.f32.gmra.mrb[0].mxu0 %v625
      %v746 = vpop.f32.mrb[0].mxu0
      %v747 = vadd.f32 %v615, %v746
      %v748 = vpop.f32.mrb[0].mxu0
      %749 = vmatprep.mubr.f32.mxu0 0.0
      %750 = vmatmul.mubr.f32.gmra.mrb[0].mxu0 %v628
      %v751 = vpop.f32.mrb[0].mxu0
      %v752 = vadd.f32 %v615, %v751
      %v753 = vpop.f32.mrb[0].mxu0
      %754 = vmatprep.mubr.f32.mxu0 0.0
      %755 = vmatmul.mubr.f32.gmra.mrb[0].mxu0 %v631
      %v756 = vpop.f32.mrb[0].mxu0
      %v757 = vadd.f32 %v615, %v756
      %v758 = vpop.f32.mrb[0].mxu0
      %759 = vmatprep.mubr.f32.mxu0 0.0
      %760 = vmatmul.mubr.f32.gmra.mrb[0].mxu0 %v634
      %v761 = vpop.f32.mrb[0].mxu0
      %v762 = vadd.f32 %v615, %v761
      %v763 = vpop.f32.mrb[0].mxu0
      %764 = vmatprep.mubr.f32.mxu0 0.0
      %765 = vmatmul.mubr.f32.gmra.mrb[0].mxu0 %v637
      %v766 = vpop.f32.mrb[0].mxu0
      %v767 = vadd.f32 %v615, %v766
      %v768 = vpop.f32.mrb[0].mxu0
      %769 = vmatprep.mubr.f32.mxu0 0.0
      %770 = vmatmul.mubr.f32.gmra.mrb[0].mxu0 %v640
      %v771 = vpop.f32.mrb[0].mxu0
      %v772 = vadd.f32 %v615, %v771
      %v773 = vpop.f32.mrb[0].mxu0
      %774 = vmatprep.mubr.f32.mxu0 0.0
      %775 = vmatmul.mubr.f32.gmra.mrb[0].mxu0 %v643
      %v776 = vpop.f32.mrb[0].mxu0
      %v777 = vadd.f32 %v615, %v776
      %v778 = vpop.f32.mrb[0].mxu0
      %779 = vmatprep.mubr.f32.mxu0 0.0
      %780 = vmatmul.mubr.f32.gmra.mrb[0].mxu0 %v646
      %v781 = vpop.f32.mrb[0].mxu0
      %v782 = vadd.f32 %v615, %v781
      %v783 = vpop.f32.mrb[0].mxu0
      %784 = vmatprep.mubr.f32.mxu0 0.0
      %785 = vmatmul.mubr.f32.gmra.mrb[0].mxu0 %v649
      %v786 = vpop.f32.mrb[0].mxu0
      %v787 = vadd.f32 %v615, %v786
      %v788 = vpop.f32.mrb[0].mxu0
      %789 = vmatprep.mubr.f32.mxu0 0.0
      %790 = vmatmul.mubr.f32.gmra.mrb[0].mxu0 %v652
      %v791 = vpop.f32.mrb[0].mxu0
      %v792 = vadd.f32 %v615, %v791
      %v793 = vpop.f32.mrb[0].mxu0
      %794 = vmatprep.mubr.f32.mxu0 0.0
      %795 = vmatmul.mubr.f32.gmra.mrb[0].mxu0 %v655
      %v796 = vpop.f32.mrb[0].mxu0
      %v797 = vadd.f32 %v615, %v796
      %v798 = vpop.f32.mrb[0].mxu0
      %799 = vmatprep.mubr.f32.mxu0 0.0
      %800 = vmatmul.mubr.f32.gmra.mrb[0].mxu0 %v658
      %v801 = vpop.f32.mrb[0].mxu0
      %v802 = vadd.f32 %v615, %v801
      %v803 = vpop.f32.mrb[0].mxu0
      %804 = vmatprep.mubr.f32.mxu0 0.0
      %805 = vmatmul.mubr.f32.gmra.mrb[0].mxu0 %v661
      %v806 = vpop.f32.mrb[0].mxu0
      %v807 = vadd.f32 %v615, %v806
      %v808 = vpop.f32.mrb[0].mxu0
      %809 = vmatprep.mubr.f32.mxu0 0.0
      %810 = vmatmul.mubr.f32.gmra.mrb[0].mxu0 %v664
      %v811 = vpop.f32.mrb[0].mxu0
      %v812 = vadd.f32 %v615, %v811
      %v813 = vpop.f32.mrb[0].mxu0
      %814 = vdwg.mxu0
      %v815 = vmax.f32 %v737, 0.0
      %v816 = vmax.f32 %v742, 0.0
      %v817 = vmax.f32 %v747, 0.0
      %v818 = vmax.f32 %v752, 0.0
      %v819 = vmax.f32 %v757, 0.0
      %v820 = vmax.f32 %v762, 0.0
      %v821 = vmax.f32 %v767, 0.0
      %v822 = vmax.f32 %v772, 0.0
      %v823 = vmax.f32 %v777, 0.0
      %v824 = vmax.f32 %v782, 0.0
      %v825 = vmax.f32 %v787, 0.0
      %v826 = vmax.f32 %v792, 0.0
      %v827 = vmax.f32 %v797, 0.0
      %v828 = vmax.f32 %v802, 0.0
      %v829 = vmax.f32 %v807, 0.0
      %v830 = vmax.f32 %v812, 0.0
      %v831 = vld [vmem:[%s5] sm:$0xff]
      %v832 = vld [vmem:[%s5 + $0x8] sm:$0x3f]
      %v833 = vld [vmem:[%s6] sm:$0x1]
      %v835 = vlaneseq
      %v836 = vshrl.u32 %v835, 7
      %v837 = vsub.s32 0, %v836
      %v838 = vrot.slane %v833, %v837
      %vm840 = vcmask 113664
      %v842 = vsel %vm840, %v815, 0
      %v845 = vsel %vm840, %v816, 0
      %v848 = vsel %vm840, %v817, 0
      %v851 = vsel %vm840, %v818, 0
      %v854 = vsel %vm840, %v819, 0
      %v857 = vsel %vm840, %v820, 0
      %v860 = vsel %vm840, %v821, 0
      %v863 = vsel %vm840, %v822, 0
      %v866 = vsel %vm840, %v823, 0
      %v869 = vsel %vm840, %v824, 0
      %v872 = vsel %vm840, %v825, 0
      %v875 = vsel %vm840, %v826, 0
      %v878 = vsel %vm840, %v827, 0
      %v881 = vsel %vm840, %v828, 0
      %v884 = vsel %vm840, %v829, 0
      %v887 = vsel %vm840, %v830, 0
      %vm889 = vcmask 1045504
      %v891 = vsel %vm889, %v832, 0
      %893 = vmatprep.subr.mxu0 0.0
      %894 = vmatpush1.msra.mxu0 %v831
      %895 = vmatprep.subr.mxu0 0.0
      %896 = vmatpush1.msra.mxu0 %v891
      %897 = vmatprep.subr.mxu0 0.0
      %898 = vmatpush1.msra.mxu0 0.0
      %899 = vmatprep.subr.mxu0 0.0
      %900 = vmatpush1.msra.mxu0 0.0
      %901 = vmatprep.subr.mxu0 0.0
      %902 = vmatpush1.msra.mxu0 0.0
      %903 = vmatprep.subr.mxu0 0.0
      %904 = vmatpush1.msra.mxu0 0.0
      %905 = vmatprep.subr.mxu0 0.0
      %906 = vmatpush1.msra.mxu0 0.0
      %907 = vmatprep.subr.mxu0 0.0
      %908 = vmatpush1.msra.mxu0 0.0
      %909 = vmatprep.subr.mxu0 0.0
      %910 = vmatpush1.msra.mxu0 0.0
      %911 = vmatprep.subr.mxu0 0.0
      %912 = vmatpush1.msra.mxu0 0.0
      %913 = vmatprep.subr.mxu0 0.0
      %914 = vmatpush1.msra.mxu0 0.0
      %915 = vmatprep.subr.mxu0 0.0
      %916 = vmatpush1.msra.mxu0 0.0
      %917 = vmatprep.subr.mxu0 0.0
      %918 = vmatpush1.msra.mxu0 0.0
      %919 = vmatprep.subr.mxu0 0.0
      %920 = vmatpush1.msra.mxu0 0.0
      %921 = vmatprep.subr.mxu0 0.0
      %922 = vmatpush1.msra.mxu0 0.0
      %923 = vmatprep.subr.mxu0 0.0
      %924 = vmatpush1.msra.mxu0 0.0
      %925 = vmatprep.subr.mxu0 0.0
      %926 = vmatpush1.msra.mxu0 0.0
      %927 = vmatprep.subr.mxu0 0.0
      %928 = vmatpush1.msra.mxu0 0.0
      %929 = vmatprep.subr.mxu0 0.0
      %930 = vmatpush1.msra.mxu0 0.0
      %931 = vmatprep.subr.mxu0 0.0
      %932 = vmatpush1.msra.mxu0 0.0
      %933 = vmatprep.subr.mxu0 0.0
      %934 = vmatpush1.msra.mxu0 0.0
      %935 = vmatprep.subr.mxu0 0.0
      %936 = vmatpush1.msra.mxu0 0.0
      %937 = vmatprep.subr.mxu0 0.0
      %938 = vmatpush1.msra.mxu0 0.0
      %939 = vmatprep.subr.mxu0 0.0
      %940 = vmatpush1.msra.mxu0 0.0
      %941 = vmatprep.subr.mxu0 0.0
      %942 = vmatpush1.msra.mxu0 0.0
      %943 = vmatprep.subr.mxu0 0.0
      %944 = vmatpush1.msra.mxu0 0.0
      %945 = vmatprep.subr.mxu0 0.0
      %946 = vmatpush1.msra.mxu0 0.0
      %947 = vmatprep.subr.mxu0 0.0
      %948 = vmatpush1.msra.mxu0 0.0
      %949 = vmatprep.subr.mxu0 0.0
      %950 = vmatpush1.msra.mxu0 0.0
      %951 = vmatprep.subr.mxu0 0.0
      %952 = vmatpush1.msra.mxu0 0.0
      %953 = vmatprep.subr.mxu0 0.0
      %954 = vmatpush1.msra.mxu0 0.0
      %955 = vmatprep.subr.mxu0 0.0
      %956 = vmatpush1.msra.mxu0 0.0
      %957 = vmatprep.mubr.f32.mxu0 0.0
      %958 = vmatmul.mubr.f32.gmra.mrb[0].mxu0 %v842
      %v959 = vpop.f32.mrb[0].mxu0
      %v960 = vadd.f32 %v838, %v959
      %v961 = vpop.f32.mrb[0].mxu0
      %962 = vmatprep.mubr.f32.mxu0 0.0
      %963 = vmatmul.mubr.f32.gmra.mrb[0].mxu0 %v845
      %v964 = vpop.f32.mrb[0].mxu0
      %v965 = vadd.f32 %v838, %v964
      %v966 = vpop.f32.mrb[0].mxu0
      %967 = vmatprep.mubr.f32.mxu0 0.0
      %968 = vmatmul.mubr.f32.gmra.mrb[0].mxu0 %v848
      %v969 = vpop.f32.mrb[0].mxu0
      %v970 = vadd.f32 %v838, %v969
      %v971 = vpop.f32.mrb[0].mxu0
      %972 = vmatprep.mubr.f32.mxu0 0.0
      %973 = vmatmul.mubr.f32.gmra.mrb[0].mxu0 %v851
      %v974 = vpop.f32.mrb[0].mxu0
      %v975 = vadd.f32 %v838, %v974
      %v976 = vpop.f32.mrb[0].mxu0
      %977 = vmatprep.mubr.f32.mxu0 0.0
      %978 = vmatmul.mubr.f32.gmra.mrb[0].mxu0 %v854
      %v979 = vpop.f32.mrb[0].mxu0
      %v980 = vadd.f32 %v838, %v979
      %v981 = vpop.f32.mrb[0].mxu0
      %982 = vmatprep.mubr.f32.mxu0 0.0
      %983 = vmatmul.mubr.f32.gmra.mrb[0].mxu0 %v857
      %v984 = vpop.f32.mrb[0].mxu0
      %v985 = vadd.f32 %v838, %v984
      %v986 = vpop.f32.mrb[0].mxu0
      %987 = vmatprep.mubr.f32.mxu0 0.0
      %988 = vmatmul.mubr.f32.gmra.mrb[0].mxu0 %v860
      %v989 = vpop.f32.mrb[0].mxu0
      %v990 = vadd.f32 %v838, %v989
      %v991 = vpop.f32.mrb[0].mxu0
      %992 = vmatprep.mubr.f32.mxu0 0.0
      %993 = vmatmul.mubr.f32.gmra.mrb[0].mxu0 %v863
      %v994 = vpop.f32.mrb[0].mxu0
      %v995 = vadd.f32 %v838, %v994
      %v996 = vpop.f32.mrb[0].mxu0
      %997 = vmatprep.mubr.f32.mxu0 0.0
      %998 = vmatmul.mubr.f32.gmra.mrb[0].mxu0 %v866
      %v999 = vpop.f32.mrb[0].mxu0
      %v1000 = vadd.f32 %v838, %v999
      %v1001 = vpop.f32.mrb[0].mxu0
      %1002 = vmatprep.mubr.f32.mxu0 0.0
      %1003 = vmatmul.mubr.f32.gmra.mrb[0].mxu0 %v869
      %v1004 = vpop.f32.mrb[0].mxu0
      %v1005 = vadd.f32 %v838, %v1004
      %v1006 = vpop.f32.mrb[0].mxu0
      %1007 = vmatprep.mubr.f32.mxu0 0.0
      %1008 = vmatmul.mubr.f32.gmra.mrb[0].mxu0 %v872
      %v1009 = vpop.f32.mrb[0].mxu0
      %v1010 = vadd.f32 %v838, %v1009
      %v1011 = vpop.f32.mrb[0].mxu0
      %1012 = vmatprep.mubr.f32.mxu0 0.0
      %1013 = vmatmul.mubr.f32.gmra.mrb[0].mxu0 %v875
      %v1014 = vpop.f32.mrb[0].mxu0
      %v1015 = vadd.f32 %v838, %v1014
      %v1016 = vpop.f32.mrb[0].mxu0
      %1017 = vmatprep.mubr.f32.mxu0 0.0
      %1018 = vmatmul.mubr.f32.gmra.mrb[0].mxu0 %v878
      %v1019 = vpop.f32.mrb[0].mxu0
      %v1020 = vadd.f32 %v838, %v1019
      %v1021 = vpop.f32.mrb[0].mxu0
      %1022 = vmatprep.mubr.f32.mxu0 0.0
      %1023 = vmatmul.mubr.f32.gmra.mrb[0].mxu0 %v881
      %v1024 = vpop.f32.mrb[0].mxu0
      %v1025 = vadd.f32 %v838, %v1024
      %v1026 = vpop.f32.mrb[0].mxu0
      %1027 = vmatprep.mubr.f32.mxu0 0.0
      %1028 = vmatmul.mubr.f32.gmra.mrb[0].mxu0 %v884
      %v1029 = vpop.f32.mrb[0].mxu0
      %v1030 = vadd.f32 %v838, %v1029
      %v1031 = vpop.f32.mrb[0].mxu0
      %1032 = vmatprep.mubr.f32.mxu0 0.0
      %1033 = vmatmul.mubr.f32.gmra.mrb[0].mxu0 %v887
      %v1034 = vpop.f32.mrb[0].mxu0
      %v1035 = vadd.f32 %v838, %v1034
      %v1036 = vpop.f32.mrb[0].mxu0
      %1037 = vdwg.mxu0
      %v1038 = vmax.f32 %v960, 0.0
      %v1039 = vmax.f32 %v965, 0.0
      %v1040 = vmax.f32 %v970, 0.0
      %v1041 = vmax.f32 %v975, 0.0
      %v1042 = vmax.f32 %v980, 0.0
      %v1043 = vmax.f32 %v985, 0.0
      %v1044 = vmax.f32 %v990, 0.0
      %v1045 = vmax.f32 %v995, 0.0
      %v1046 = vmax.f32 %v1000, 0.0
      %v1047 = vmax.f32 %v1005, 0.0
      %v1048 = vmax.f32 %v1010, 0.0
      %v1049 = vmax.f32 %v1015, 0.0
      %v1050 = vmax.f32 %v1020, 0.0
      %v1051 = vmax.f32 %v1025, 0.0
      %v1052 = vmax.f32 %v1030, 0.0
      %v1053 = vmax.f32 %v1035, 0.0
      %v1054 = vld [vmem:[%s7] sm:$0xff]
      %v1055 = vld [vmem:[%s7 + $0x8] sm:$0xff]
      %v1056 = vld [vmem:[%s7 + $0x10] sm:$0x1f]
      %v1057 = vld [vmem:[%s8] sm:$0x1]
      %v1059 = vlaneseq
      %v1060 = vshrl.u32 %v1059, 7
      %v1061 = vsub.s32 0, %v1060
      %v1062 = vrot.slane %v1057, %v1061
      %v1065 = vsel %vm617, %v1038, 0
      %v1068 = vsel %vm617, %v1039, 0
      %v1071 = vsel %vm617, %v1040, 0
      %v1074 = vsel %vm617, %v1041, 0
      %v1077 = vsel %vm617, %v1042, 0
      %v1080 = vsel %vm617, %v1043, 0
      %v1083 = vsel %vm617, %v1044, 0
      %v1086 = vsel %vm617, %v1045, 0
      %v1089 = vsel %vm617, %v1046, 0
      %v1092 = vsel %vm617, %v1047, 0
      %v1095 = vsel %vm617, %v1048, 0
      %v1098 = vsel %vm617, %v1049, 0
      %v1101 = vsel %vm617, %v1050, 0
      %v1104 = vsel %vm617, %v1051, 0
      %v1107 = vsel %vm617, %v1052, 0
      %v1110 = vsel %vm617, %v1053, 0
      %v1113 = vsel %vm666, %v1056, 0
      %1115 = vmatprep.subr.mxu0 0.0
      %1116 = vmatpush1.msra.mxu0 %v1054
      %1117 = vmatprep.subr.mxu0 0.0
      %1118 = vmatpush1.msra.mxu0 %v1055
      %1119 = vmatprep.subr.mxu0 0.0
      %1120 = vmatpush1.msra.mxu0 %v1113
      %1121 = vmatprep.subr.mxu0 0.0
      %1122 = vmatpush1.msra.mxu0 0.0
      %1123 = vmatprep.subr.mxu0 0.0
      %1124 = vmatpush1.msra.mxu0 0.0
      %1125 = vmatprep.subr.mxu0 0.0
      %1126 = vmatpush1.msra.mxu0 0.0
      %1127 = vmatprep.subr.mxu0 0.0
      %1128 = vmatpush1.msra.mxu0 0.0
      %1129 = vmatprep.subr.mxu0 0.0
      %1130 = vmatpush1.msra.mxu0 0.0
      %1131 = vmatprep.subr.mxu0 0.0
      %1132 = vmatpush1.msra.mxu0 0.0
      %1133 = vmatprep.subr.mxu0 0.0
      %1134 = vmatpush1.msra.mxu0 0.0
      %1135 = vmatprep.subr.mxu0 0.0
      %1136 = vmatpush1.msra.mxu0 0.0
      %1137 = vmatprep.subr.mxu0 0.0
      %1138 = vmatpush1.msra.mxu0 0.0
      %1139 = vmatprep.subr.mxu0 0.0
      %1140 = vmatpush1.msra.mxu0 0.0
      %1141 = vmatprep.subr.mxu0 0.0
      %1142 = vmatpush1.msra.mxu0 0.0
      %1143 = vmatprep.subr.mxu0 0.0
      %1144 = vmatpush1.msra.mxu0 0.0
      %1145 = vmatprep.subr.mxu0 0.0
      %1146 = vmatpush1.msra.mxu0 0.0
      %1147 = vmatprep.subr.mxu0 0.0
      %1148 = vmatpush1.msra.mxu0 0.0
      %1149 = vmatprep.subr.mxu0 0.0
      %1150 = vmatpush1.msra.mxu0 0.0
      %1151 = vmatprep.subr.mxu0 0.0
      %1152 = vmatpush1.msra.mxu0 0.0
      %1153 = vmatprep.subr.mxu0 0.0
      %1154 = vmatpush1.msra.mxu0 0.0
      %1155 = vmatprep.subr.mxu0 0.0
      %1156 = vmatpush1.msra.mxu0 0.0
      %1157 = vmatprep.subr.mxu0 0.0
      %1158 = vmatpush1.msra.mxu0 0.0
      %1159 = vmatprep.subr.mxu0 0.0
      %1160 = vmatpush1.msra.mxu0 0.0
      %1161 = vmatprep.subr.mxu0 0.0
      %1162 = vmatpush1.msra.mxu0 0.0
      %1163 = vmatprep.subr.mxu0 0.0
      %1164 = vmatpush1.msra.mxu0 0.0
      %1165 = vmatprep.subr.mxu0 0.0
      %1166 = vmatpush1.msra.mxu0 0.0
      %1167 = vmatprep.subr.mxu0 0.0
      %1168 = vmatpush1.msra.mxu0 0.0
      %1169 = vmatprep.subr.mxu0 0.0
      %1170 = vmatpush1.msra.mxu0 0.0
      %1171 = vmatprep.subr.mxu0 0.0
      %1172 = vmatpush1.msra.mxu0 0.0
      %1173 = vmatprep.subr.mxu0 0.0
      %1174 = vmatpush1.msra.mxu0 0.0
      %1175 = vmatprep.subr.mxu0 0.0
      %1176 = vmatpush1.msra.mxu0 0.0
      %1177 = vmatprep.subr.mxu0 0.0
      %1178 = vmatpush1.msra.mxu0 0.0
      %1179 = vmatprep.mubr.f32.mxu0 0.0
      %1180 = vmatmul.mubr.f32.gmra.mrb[0].mxu0 %v1065
      %v1181 = vpop.f32.mrb[0].mxu0
      %v1182 = vadd.f32 %v1062, %v1181
      %v1183 = vpop.f32.mrb[0].mxu0
      %1184 = vmatprep.mubr.f32.mxu0 0.0
      %1185 = vmatmul.mubr.f32.gmra.mrb[0].mxu0 %v1068
      %v1186 = vpop.f32.mrb[0].mxu0
      %v1187 = vadd.f32 %v1062, %v1186
      %v1188 = vpop.f32.mrb[0].mxu0
      %1189 = vmatprep.mubr.f32.mxu0 0.0
      %1190 = vmatmul.mubr.f32.gmra.mrb[0].mxu0 %v1071
      %v1191 = vpop.f32.mrb[0].mxu0
      %v1192 = vadd.f32 %v1062, %v1191
      %v1193 = vpop.f32.mrb[0].mxu0
      %1194 = vmatprep.mubr.f32.mxu0 0.0
      %1195 = vmatmul.mubr.f32.gmra.mrb[0].mxu0 %v1074
      %v1196 = vpop.f32.mrb[0].mxu0
      %v1197 = vadd.f32 %v1062, %v1196
      %v1198 = vpop.f32.mrb[0].mxu0
      %1199 = vmatprep.mubr.f32.mxu0 0.0
      %1200 = vmatmul.mubr.f32.gmra.mrb[0].mxu0 %v1077
      %v1201 = vpop.f32.mrb[0].mxu0
      %v1202 = vadd.f32 %v1062, %v1201
      %v1203 = vpop.f32.mrb[0].mxu0
      %1204 = vmatprep.mubr.f32.mxu0 0.0
      %1205 = vmatmul.mubr.f32.gmra.mrb[0].mxu0 %v1080
      %v1206 = vpop.f32.mrb[0].mxu0
      %v1207 = vadd.f32 %v1062, %v1206
      %v1208 = vpop.f32.mrb[0].mxu0
      %1209 = vmatprep.mubr.f32.mxu0 0.0
      %1210 = vmatmul.mubr.f32.gmra.mrb[0].mxu0 %v1083
      %v1211 = vpop.f32.mrb[0].mxu0
      %v1212 = vadd.f32 %v1062, %v1211
      %v1213 = vpop.f32.mrb[0].mxu0
      %1214 = vmatprep.mubr.f32.mxu0 0.0
      %1215 = vmatmul.mubr.f32.gmra.mrb[0].mxu0 %v1086
      %v1216 = vpop.f32.mrb[0].mxu0
      %v1217 = vadd.f32 %v1062, %v1216
      %v1218 = vpop.f32.mrb[0].mxu0
      %1219 = vmatprep.mubr.f32.mxu0 0.0
      %1220 = vmatmul.mubr.f32.gmra.mrb[0].mxu0 %v1089
      %v1221 = vpop.f32.mrb[0].mxu0
      %v1222 = vadd.f32 %v1062, %v1221
      %v1223 = vpop.f32.mrb[0].mxu0
      %1224 = vmatprep.mubr.f32.mxu0 0.0
      %1225 = vmatmul.mubr.f32.gmra.mrb[0].mxu0 %v1092
      %v1226 = vpop.f32.mrb[0].mxu0
      %v1227 = vadd.f32 %v1062, %v1226
      %v1228 = vpop.f32.mrb[0].mxu0
      %1229 = vmatprep.mubr.f32.mxu0 0.0
      %1230 = vmatmul.mubr.f32.gmra.mrb[0].mxu0 %v1095
      %v1231 = vpop.f32.mrb[0].mxu0
      %v1232 = vadd.f32 %v1062, %v1231
      %v1233 = vpop.f32.mrb[0].mxu0
      %1234 = vmatprep.mubr.f32.mxu0 0.0
      %1235 = vmatmul.mubr.f32.gmra.mrb[0].mxu0 %v1098
      %v1236 = vpop.f32.mrb[0].mxu0
      %v1237 = vadd.f32 %v1062, %v1236
      %v1238 = vpop.f32.mrb[0].mxu0
      %1239 = vmatprep.mubr.f32.mxu0 0.0
      %1240 = vmatmul.mubr.f32.gmra.mrb[0].mxu0 %v1101
      %v1241 = vpop.f32.mrb[0].mxu0
      %v1242 = vadd.f32 %v1062, %v1241
      %v1243 = vpop.f32.mrb[0].mxu0
      %1244 = vmatprep.mubr.f32.mxu0 0.0
      %1245 = vmatmul.mubr.f32.gmra.mrb[0].mxu0 %v1104
      %v1246 = vpop.f32.mrb[0].mxu0
      %v1247 = vadd.f32 %v1062, %v1246
      %v1248 = vpop.f32.mrb[0].mxu0
      %1249 = vmatprep.mubr.f32.mxu0 0.0
      %1250 = vmatmul.mubr.f32.gmra.mrb[0].mxu0 %v1107
      %v1251 = vpop.f32.mrb[0].mxu0
      %v1252 = vadd.f32 %v1062, %v1251
      %v1253 = vpop.f32.mrb[0].mxu0
      %1254 = vmatprep.mubr.f32.mxu0 0.0
      %1255 = vmatmul.mubr.f32.gmra.mrb[0].mxu0 %v1110
      %v1256 = vpop.f32.mrb[0].mxu0
      %v1257 = vadd.f32 %v1062, %v1256
      %v1258 = vpop.f32.mrb[0].mxu0
      %1259 = vdwg.mxu0
      %s1260 = sld [smem:[#allocation2]]
      %vm1261 = vcmp.gt.f32.partialorder %v1182, 0.0
      %vm1262 = vcmp.gt.f32.partialorder %v1187, 0.0
      %vm1263 = vcmp.gt.f32.partialorder %v1192, 0.0
      %vm1264 = vcmp.gt.f32.partialorder %v1197, 0.0
      %vm1265 = vcmp.gt.f32.partialorder %v1202, 0.0
      %vm1266 = vcmp.gt.f32.partialorder %v1207, 0.0
      %vm1267 = vcmp.gt.f32.partialorder %v1212, 0.0
      %vm1268 = vcmp.gt.f32.partialorder %v1217, 0.0
      %vm1269 = vcmp.gt.f32.partialorder %v1222, 0.0
      %vm1270 = vcmp.gt.f32.partialorder %v1227, 0.0
      %vm1271 = vcmp.gt.f32.partialorder %v1232, 0.0
      %vm1272 = vcmp.gt.f32.partialorder %v1237, 0.0
      %vm1273 = vcmp.gt.f32.partialorder %v1242, 0.0
      %vm1274 = vcmp.gt.f32.partialorder %v1247, 0.0
      %vm1275 = vcmp.gt.f32.partialorder %v1252, 0.0
      %vm1276 = vcmp.gt.f32.partialorder %v1257, 0.0
      %v1277 = vstv %s1260
      %v1278 = vmul.f32 %v1277, %v1182
      %v1279 = vmul.f32 %v1277, %v1187
      %v1280 = vmul.f32 %v1277, %v1192
      %v1281 = vmul.f32 %v1277, %v1197
      %v1282 = vmul.f32 %v1277, %v1202
      %v1283 = vmul.f32 %v1277, %v1207
      %v1284 = vmul.f32 %v1277, %v1212
      %v1285 = vmul.f32 %v1277, %v1217
      %v1286 = vmul.f32 %v1277, %v1222
      %v1287 = vmul.f32 %v1277, %v1227
      %v1288 = vmul.f32 %v1277, %v1232
      %v1289 = vmul.f32 %v1277, %v1237
      %v1290 = vmul.f32 %v1277, %v1242
      %v1291 = vmul.f32 %v1277, %v1247
      %v1292 = vmul.f32 %v1277, %v1252
      %v1293 = vmul.f32 %v1277, %v1257
      %v1294 = vsel %vm1261, %v1182, %v1278
      %v1295 = vsel %vm1262, %v1187, %v1279
      %v1296 = vsel %vm1263, %v1192, %v1280
      %v1297 = vsel %vm1264, %v1197, %v1281
      %v1298 = vsel %vm1265, %v1202, %v1282
      %v1299 = vsel %vm1266, %v1207, %v1283
      %v1300 = vsel %vm1267, %v1212, %v1284
      %v1301 = vsel %vm1268, %v1217, %v1285
      %v1302 = vsel %vm1269, %v1222, %v1286
      %v1303 = vsel %vm1270, %v1227, %v1287
      %v1304 = vsel %vm1271, %v1232, %v1288
      %v1305 = vsel %vm1272, %v1237, %v1289
      %v1306 = vsel %vm1273, %v1242, %v1290
      %v1307 = vsel %vm1274, %v1247, %v1291
      %v1308 = vsel %vm1275, %v1252, %v1292
      %v1309 = vsel %vm1276, %v1257, %v1293
      %1310 = vst.msk [vmem:[%s362] sm:$0xff] %vm393, %v1294
      %1311 = vst.msk [vmem:[%s362 + $0x8] sm:$0xff] %vm393, %v1295
      %1312 = vst.msk [vmem:[%s362 + $0x10] sm:$0xff] %vm393, %v1296
      %1313 = vst.msk [vmem:[%s362 + $0x18] sm:$0xff] %vm393, %v1297
      %1314 = vst.msk [vmem:[%s362 + $0x20] sm:$0xff] %vm393, %v1298
      %1315 = vst.msk [vmem:[%s362 + $0x28] sm:$0xff] %vm393, %v1299
      %1316 = vst.msk [vmem:[%s362 + $0x30] sm:$0xff] %vm393, %v1300
      %1317 = vst.msk [vmem:[%s362 + $0x38] sm:$0xff] %vm393, %v1301
      %1318 = vst.msk [vmem:[%s362 + $0x40] sm:$0xff] %vm393, %v1302
      %1319 = vst.msk [vmem:[%s362 + $0x48] sm:$0xff] %vm393, %v1303
      %1320 = vst.msk [vmem:[%s362 + $0x50] sm:$0xff] %vm393, %v1304
      %1321 = vst.msk [vmem:[%s362 + $0x58] sm:$0xff] %vm393, %v1305
      %1322 = vst.msk [vmem:[%s362 + $0x60] sm:$0xff] %vm393, %v1306
      %1323 = vst.msk [vmem:[%s362 + $0x68] sm:$0xff] %vm393, %v1307
      %1324 = vst.msk [vmem:[%s362 + $0x70] sm:$0xff] %vm393, %v1308
      %1325 = vst.msk [vmem:[%s362 + $0x78] sm:$0xff] %vm393, %v1309
      %s1326 = smul.u32 16, %s22
      %p1327 = scmp.lt.s32.totalorder %s1326, 47
      %s1328 = scalar_select %p1327, %s1326, 47
      %s1329 = smul.addr %s1328, 8
      %s1330 = scalar_lea.vmem %s10, %s1329
      // Predicated region
      $region61: #{tpu_custom_call.1} parent=59 // pred_check
        %p1331 = pneg %p255
      $region62: #{tpu_custom_call.1} parent=59 // pred_check_branch
        %1333 = sbr.rel (%p1331) target = $region64
      $region63: #{tpu_custom_call.1} parent=59 // pred_region
        %s1334 = smul.u32 16, %s22
      $region64: #{tpu_custom_call.1} parent=59 // pred_fallthru
        _
    $region60: #{tpu_custom_call.1} parent=5 // pred_fallthru
      _
    %p1335 = scmp.le.s32.totalorder 2, %s17
    // Predicated region
    $region65: #{tpu_custom_call.1} parent=5 // pred_check
      %p1336 = pneg %p1335
    $region66: #{tpu_custom_call.1} parent=5 // pred_check_branch
      %1338 = sbr.rel (%p1336) target = $region68
    $region67: #{tpu_custom_call.1} parent=5 // pred_region
      %s1339 = ssub.s32 %s17, 2
      // Predicated region
      $region69: #{tpu_custom_call.1} parent=67 // pred_check
        %p1340 = pneg %p261
      $region70: #{tpu_custom_call.1} parent=67 // pred_check_branch
        %1342 = sbr.rel (%p1340) target = $region72
      $region71: #{tpu_custom_call.1} parent=67 // pred_region
        %s1343 = smul.u32 16, %s23
        %p1344 = scmp.lt.s32.totalorder %s1343, 47
        %s1345 = scalar_select %p1344, %s1343, 47
        %s1346 = smul.addr %s1345, 8
        %s1347 = scalar_lea.vmem %s10, %s1346
      $region72: #{tpu_custom_call.1} parent=67 // pred_fallthru
        _
    $region68: #{tpu_custom_call.1} parent=5 // pred_fallthru
      _
  $region6: #{tpu_custom_call.1} parent=0 // loop_footer
    %s21 = sadd.s32 1, %s17
  $region7: #{tpu_custom_call.1} parent=0 // loop_footer_branch
    %16 = sbr.rel target = $region3
  $region8: #{tpu_custom_call.1} parent=0 // loop_exit
    _

</llo_original>
